<compile_context>
chip_gen: v6e
topology: v6e:2x2x1
jax: 0.10.0
libtpu: 0.0.40
codegen_flags: <defaults>
</compile_context>

<pallas_src>
import jax
import jax.numpy as jnp
import numpy as np
from jax.experimental import pallas as pl
from jax.experimental.pallas import tpu as pltpu

_LANES = 128
_BLOCK_BYTES = 4 * 1024 * 1024  # ~4 MiB per block: 4 bufs x 4 MiB << scoped VMEM on all chips


def _copy_kernel(x_ref, o_ref):
    # Pure tile copy; BlockSpec pipelining (prefetch i+1 / writeback i-1)
    # makes this a memory-bandwidth-bound kernel with no compute.
    o_ref[...] = x_ref[...]


def _sublane_pack(dtype) -> int:
    # Native sublane packing: 8 for 32-bit, 16 for 16-bit, 32 for 8-bit dtypes.
    itemsize = jnp.dtype(dtype).itemsize
    return max(8, 32 // max(itemsize, 1))


def _pallas_copy(x):
    """Materialized lane-dense tiled copy of x via Pallas (value identity)."""
    orig_shape = x.shape
    n = x.size
    if n == 0:
        return x

    itemsize = jnp.dtype(x.dtype).itemsize
    pack = _sublane_pack(x.dtype)

    flat = x.reshape(-1)
    rows = pl.cdiv(n, _LANES)
    padded = rows * _LANES
    if padded != n:
        # Only the ragged final lane-row is padded (at most 127 elements);
        # aligned inputs take the zero-copy path with no pad and no slice.
        flat = jnp.pad(flat, (0, padded - n))
    x2 = flat.reshape(rows, _LANES)

    max_rows = max(pack, (_BLOCK_BYTES // (_LANES * itemsize)) // pack * pack)
    if rows <= max_rows:
        row_tile = rows                      # single full-extent block (always legal)
        grid = (1,)
    else:
        row_tile = max_rows                  # multiple of the sublane packing
        grid = (pl.cdiv(rows, row_tile),)    # Pallas clips the ragged last block

    out2 = pl.pallas_call(
        _copy_kernel,
        out_shape=jax.ShapeDtypeStruct((rows, _LANES), x.dtype),
        grid_spec=pltpu.PrefetchScalarGridSpec(
            num_scalar_prefetch=0,
            grid=grid,
            in_specs=[pl.BlockSpec((row_tile, _LANES), lambda i: (i, 0))],
            out_specs=pl.BlockSpec((row_tile, _LANES), lambda i: (i, 0)),
        ),
        compiler_params=pltpu.CompilerParams(
            dimension_semantics=("parallel",),
            vmem_limit_bytes=48 << 20,
        ),
        cost_estimate=pl.CostEstimate(
            flops=0, transcendentals=0, bytes_accessed=2 * n * itemsize),
        # Alias the (only) input to the output: no second HBM buffer needed
        # when the operand is donatable; the kernel is a value identity so the
        # aliasing is trivially safe.
        input_output_aliases={0: 0},
    )(x2)

    out = out2
    if padded != n:
        out = out.reshape(-1)[:n]
    return out.reshape(orig_shape)


def cpu_forward(x, *args, materialize_copy=False, **kwargs):
    """Pallas equivalent of CPU()(x).

    `.cpu()` is identity on values, so by default this short-circuits and
    returns `x` with zero HBM traffic (the dominant optimization).  Pass
    materialize_copy=True to force the tiled Pallas copy kernel.

    TODO(synk): actual host placement of `.cpu()` (and memory_format /
    non_blocking kwargs) has no Pallas equivalent; if host residence is
    required, apply `jax.device_put(out, jax.devices("cpu")[0])` outside the
    kernel.
    """
    del args, kwargs
    if not materialize_copy:
        return x
    return _pallas_copy(x)


if __name__ == "__main__":
    key = jax.random.PRNGKey(0)
    # Small shape consistent with the module's generic tensor input.
    x = jax.random.normal(key, (2, 4, 16, 16), dtype=jnp.float32)

    # Default (optimized) path: identity short-circuit, no kernel launched.
    out_fast = jax.block_until_ready(cpu_forward(x))
    np.testing.assert_array_equal(np.asarray(out_fast), np.asarray(x))

    # Exercise the Pallas copy kernel once and verify it is a value identity.
    out_copy = jax.block_until_ready(cpu_forward(x, materialize_copy=True))
    np.testing.assert_array_equal(np.asarray(out_copy), np.asarray(x))

    print("KERNEL_OK")
</pallas_src>

<mosaic_0001>
module attributes {stable_mosaic.version = 11 : i64} {
  func.func @_copy_kernel(%arg0: i32, %arg1: memref<16x128xf32, #tpu.memory_space<vmem>>, %arg2: memref<16x128xf32, #tpu.memory_space<vmem>>) attributes {dimension_semantics = [#tpu.dimension_semantics<parallel>], iteration_bounds = array<i64: 1>, scalar_prefetch = 0 : i64, scratch_operands = 0 : i64, tpu.core_type = #tpu.core_type<tc>, window_params = [{transform_indices = @transform_0, window_bounds = array<i64: 16, 128>}, {transform_indices = @transform_1, window_bounds = array<i64: 16, 128>}]} {
    %c0 = arith.constant 0 : index
    %c0_0 = arith.constant 0 : index
    %0 = vector.load %arg1[%c0, %c0_0] : memref<16x128xf32, #tpu.memory_space<vmem>>, vector<16x128xf32>
    %c0_1 = arith.constant 0 : index
    %c0_2 = arith.constant 0 : index
    %1 = vector.load %arg2[%c0_1, %c0_2] : memref<16x128xf32, #tpu.memory_space<vmem>>, vector<16x128xf32>
    tpu.vector_store %arg2[%c0_1, %c0_2], %0 {strides = array<i32>} : memref<16x128xf32, #tpu.memory_space<vmem>>, vector<16x128xf32>,
    return
  }
  func.func @transform_0(%arg0: i32) -> (i32, i32) {
    %c0_i32 = arith.constant 0 : i32
    %c0_i32_0 = arith.constant 0 : i32
    return %arg0, %c0_i32 : i32, i32
  }
  func.func @transform_1(%arg0: i32) -> (i32, i32) {
    %c0_i32 = arith.constant 0 : i32
    %c0_i32_0 = arith.constant 0 : i32
    return %arg0, %c0_i32 : i32, i32
  }
}

</mosaic_0001>

<llo_original>
// kernel: tpu_custom_call.1
$region0: #{tpu_custom_call.1}
  #allocation0 [shape = 'u32[]', space=smem, size = 0x4, offset = 0x4, fixed_abs, tag = 'smem constant byte address 0x4 - core index']
  #allocation1 [shape = 'u32[144,128]{1,0:T(1,128)}', space=vmem, size = 0x12000, scoped, tag = 'internal scratch']
  %s0 = inlined_call_operand.hbm [shape: f32[16,128], index: 0, kind: input, shape index: {}, may-alias: {0,1}]
  %s1 = inlined_call_operand.hbm [shape: f32[16,128], index: 1, kind: output, shape index: {}, may-alias: {0,1}]
  %s2 = sld [smem:[#allocation0]]
  $region18: #{tpu_custom_call.1} parent=0
    _
  %s4 = ssub.s32 1, %s2
  %s5 = scalar_select 0, %s4, %s2
  $region1: #{tpu_custom_call.1} parent=0
    #allocation2 [shape = 'u8[8192]{0}', space=vmem, size = 0x2000, scoped, tag = 'input window, operand 0, single buffered']
    #allocation3 [shape = 's32[1]{0}', space=sflag, size = 0x4, scoped, tag = 'scoped memory for tpu_custom_call.1']
    #allocation4 [shape = 's32[1]{0}', space=sflag, size = 0x4, scoped, tag = 'scoped memory for tpu_custom_call.1']
    #allocation5 [shape = 'u8[8192]{0}', space=vmem, size = 0x2000, scoped, tag = 'output window, operand 0, single buffered']
    %6 = vsyncpa [#allocation3], 0
    %7 = vsyncpa [#allocation4], 0
    // Predicated region
    $region2: #{tpu_custom_call.1} parent=1 // pred_check
      _
    $region3: #{tpu_custom_call.1} parent=1 // pred_check_branch
      %9 = sbr.rel (0) target = $region5
    $region4: #{tpu_custom_call.1} parent=1 // pred_region
      %s11 = ssub.s32 256, 256
      %12 = vsyncadd [#allocation3], %s11
      %s13 = sshll.u32 [#allocation2], 4
      %s14 = int_to_ptr.vmem [resolvable:$true] %s13
      %19 = dma.hbm_to_vmem [thread:$0]  %s0, 256, %s14, [#allocation3], 128, 128, 8
    $region5: #{tpu_custom_call.1} parent=1 // pred_fallthru
      _
    // Predicated region
    $region6: #{tpu_custom_call.1} parent=1 // pred_check
      _
    $region7: #{tpu_custom_call.1} parent=1 // pred_check_branch
      %21 = sbr.rel (0) target = $region9
    $region8: #{tpu_custom_call.1} parent=1 // pred_region
      %22 = dma.done [#allocation3], 256
    $region9: #{tpu_custom_call.1} parent=1 // pred_fallthru
      _
    %v23 = vld [vmem:[#allocation2] sm:$0xff]
    %v24 = vld [vmem:[#allocation2 + $0x8] sm:$0xff]
    %25 = vst [vmem:[#allocation5] sm:$0xff] %v23
    %26 = vst [vmem:[#allocation5 + $0x8] sm:$0xff] %v24
    // Predicated region
    $region10: #{tpu_custom_call.1} parent=1 // pred_check
      _
    $region11: #{tpu_custom_call.1} parent=1 // pred_check_branch
      %28 = sbr.rel (0) target = $region13
    $region12: #{tpu_custom_call.1} parent=1 // pred_region
      %s30 = ssub.s32 256, 256
      %31 = vsyncadd [#allocation4], %s30
      %s32 = sshll.u32 [#allocation5], 4
      %s33 = int_to_ptr.vmem [resolvable:$true] %s32
      %38 = dma.vmem_to_hbm [thread:$0]  %s33, 256, %s1, [#allocation4], 128, 128, 8
    $region13: #{tpu_custom_call.1} parent=1 // pred_fallthru
      _
    // Predicated region
    $region14: #{tpu_custom_call.1} parent=1 // pred_check
      _
    $region15: #{tpu_custom_call.1} parent=1 // pred_check_branch
      %40 = sbr.rel (0) target = $region17
    $region16: #{tpu_custom_call.1} parent=1 // pred_region
      %41 = dma.done [#allocation4], 256
    $region17: #{tpu_custom_call.1} parent=1 // pred_fallthru
      _
    %42 = vsyncpa [#allocation3], 1
    %43 = vsyncpa [#allocation4], 1

</llo_original>
